<compile_context>
chip_gen: v6e
topology: v6e:2x2x1
jax: 0.10.0
libtpu: 0.0.40
codegen_flags: <defaults>
</compile_context>

<pallas_src>
import functools
import math

import jax
import jax.numpy as jnp
from jax import lax
from jax.experimental import pallas as pl
from jax.experimental.pallas import tpu as pltpu


def _group_norm_kernel(x_ref, w_ref, b_ref, o_ref, *, eps):
    # x_ref:        (R, D)  -- R whole (sample, group) rows, D = Cg*HW each.
    # w_ref, b_ref: (R, D)  -- per-row affine params (group-cyclic), resident
    #                          across the whole grid (constant index_map).
    x = x_ref[...].astype(jnp.float32)
    # Per-row statistics (two-pass: numerically safe, data already in VMEM).
    mean = jnp.mean(x, axis=-1, keepdims=True)          # (R, 1)
    cen = x - mean
    var = jnp.mean(cen * cen, axis=-1, keepdims=True)   # (R, 1)
    rstd = lax.rsqrt(var + eps)                         # (R, 1), EUP
    # Fold affine into a single scale/shift: out = x*scale + shift.
    scale = w_ref[...].astype(jnp.float32) * rstd       # (R, D)
    shift = b_ref[...].astype(jnp.float32) - mean * scale
    o_ref[...] = (x * scale + shift).astype(o_ref.dtype)


def _pick_row_block(NG, G, D, itemsize, target_bytes):
    """Rows per block: a multiple of both G (affine tiling) and 8 (sublane
    alignment) sized toward target_bytes, or the full (padded) row count.
    Returns (rows_per_block, padded_total_rows)."""
    unit = (G * 8) // math.gcd(G, 8)  # lcm(G, 8)
    if NG <= unit:
        return NG, NG                 # single block covering all rows
    row_bytes = max(1, D * itemsize)
    k = max(1, (target_bytes // row_bytes) // unit)
    R = unit * k
    # Keep >= 2 grid steps when possible so both v7x TensorCores get work.
    if 2 * R > NG:
        R = max(unit, (NG // 2) // unit * unit)
    R = min(R, NG)
    NGp = -(-NG // R) * R             # pad rows up to a multiple of R
    return R, NGp


def group_norm_ref(x, weight, bias, *, num_groups, eps=1e-5):
    """Pure-JAX reference, identical semantics to torch group_norm."""
    N, C, H, W = x.shape
    xr = x.reshape(N, num_groups, -1).astype(jnp.float32)
    mean = jnp.mean(xr, axis=-1, keepdims=True)
    var = jnp.mean(jnp.square(xr - mean), axis=-1, keepdims=True)
    xn = ((xr - mean) * lax.rsqrt(var + eps)).reshape(N, C, H, W)
    return (xn * weight[None, :, None, None] + bias[None, :, None, None]).astype(
        x.dtype
    )


def group_norm_pallas(
    x,
    weight,
    bias,
    *,
    num_groups,
    eps=1e-5,
    target_block_bytes=1 << 20,   # aim ~1 MiB per block (near HBM roofline)
    max_block_bytes=2 << 20,      # hard cap: keeps VMEM use v7x-safe
):
    """GroupNorm over NCHW input, matching torch.nn.functional.group_norm."""
    N, C, H, W = x.shape
    G = num_groups
    assert C % G == 0, "channels must be divisible by num_groups"
    Cg = C // G
    HW = H * W
    D = Cg * HW                    # one (sample, group) reduction window
    NG = N * G
    itemsize = jnp.dtype(x.dtype).itemsize

    R, NGp = _pick_row_block(NG, G, D, itemsize, target_block_bytes)
    if R * D * itemsize > max_block_bytes:
        # TODO(synk): groups too large for a single VMEM block need a chunked
        # sum/sum-of-squares (stats pass + normalize pass) Pallas kernel; fall
        # back to the XLA reference for now.
        return group_norm_ref(x, weight, bias, num_groups=G, eps=eps)

    # Rows = (sample, group) pairs; trailing axis is lane-dense Cg*HW.
    xr = x.reshape(NG, D)
    if NGp != NG:
        xr = jnp.pad(xr, ((0, NGp - NG), (0, 0)))  # zero rows -> finite garbage

    # Per-row affine params: group g's per-channel weight broadcast over HW,
    # tiled to R rows (row r within any block has group r % G because R % G == 0
    # and every block starts at a multiple of R).  Constant index_map keeps
    # them resident in VMEM (fetched once).
    wg = jnp.broadcast_to(weight.reshape(G, Cg, 1), (G, Cg, HW)).reshape(G, D)
    bg = jnp.broadcast_to(bias.reshape(G, Cg, 1), (G, Cg, HW)).reshape(G, D)
    reps = R // G
    w_tile = wg if reps == 1 else jnp.tile(wg, (reps, 1))
    b_tile = bg if reps == 1 else jnp.tile(bg, (reps, 1))

    kernel = functools.partial(_group_norm_kernel, eps=float(eps))
    grid = (NGp // R,)

    out = pl.pallas_call(
        kernel,
        out_shape=jax.ShapeDtypeStruct((NGp, D), x.dtype),
        grid=grid,
        in_specs=[
            pl.BlockSpec((R, D), lambda i: (i, 0)),   # x rows
            pl.BlockSpec((R, D), lambda i: (0, 0)),   # weight (resident)
            pl.BlockSpec((R, D), lambda i: (0, 0)),   # bias   (resident)
        ],
        out_specs=pl.BlockSpec((R, D), lambda i: (i, 0)),
        compiler_params=pltpu.CompilerParams(
            dimension_semantics=("parallel",),
            vmem_limit_bytes=32 * 1024 * 1024,
        ),
    )(xr, w_tile, b_tile)

    if NGp != NG:
        out = out[:NG]
    return out.reshape(N, C, H, W)


def _check(x, weight, bias, num_groups, eps):
    out = group_norm_pallas(x, weight, bias, num_groups=num_groups, eps=eps)
    out = jax.block_until_ready(out)
    ref = group_norm_ref(x, weight, bias, num_groups=num_groups, eps=eps)
    assert out.shape == x.shape and out.dtype == x.dtype
    err = jnp.max(jnp.abs(out - ref))
    assert err < 1e-4, f"mismatch vs reference: {err}"


if __name__ == "__main__":
    key = jax.random.PRNGKey(0)

    # Case 1: matches GroupNorm(num_channels=32): G = min(16, 32 // 4) = 8.
    num_channels = 32
    num_groups = min(16, num_channels // 4)
    kx, kw, kb, key = jax.random.split(key, 4)
    x = jax.random.normal(kx, (2, num_channels, 16, 16), dtype=jnp.float32)
    # __init__ uses ones/zeros; use non-trivial values to exercise the affine.
    weight = 1.0 + 0.1 * jax.random.normal(kw, (num_channels,), dtype=jnp.float32)
    bias = 0.1 * jax.random.normal(kb, (num_channels,), dtype=jnp.float32)
    _check(x, weight, bias, num_groups, 1e-5)

    # Case 2: odd shapes — exercises row padding (N*G=12 -> 16), R > G tiling,
    # and a non-128-multiple (full-dim) trailing axis (4*14*14 = 784).
    num_channels2 = 16
    num_groups2 = min(16, num_channels2 // 4)   # = 4
    kx2, kw2, kb2, key = jax.random.split(key, 4)
    x2 = jax.random.normal(kx2, (3, num_channels2, 14, 14), dtype=jnp.float32)
    weight2 = 1.0 + 0.1 * jax.random.normal(kw2, (num_channels2,), dtype=jnp.float32)
    bias2 = 0.1 * jax.random.normal(kb2, (num_channels2,), dtype=jnp.float32)
    _check(x2, weight2, bias2, num_groups2, 1e-5)

    print("KERNEL_OK")
</pallas_src>

<mosaic_0001>
module attributes {stable_mosaic.version = 11 : i64} {
  func.func @_group_norm_kernel(%arg0: i32, %arg1: memref<8x1024xf32, #tpu.memory_space<vmem>>, %arg2: memref<8x1024xf32, #tpu.memory_space<vmem>>, %arg3: memref<8x1024xf32, #tpu.memory_space<vmem>>, %arg4: memref<8x1024xf32, #tpu.memory_space<vmem>>) attributes {dimension_semantics = [#tpu.dimension_semantics<parallel>], iteration_bounds = array<i64: 2>, scalar_prefetch = 0 : i64, scratch_operands = 0 : i64, tpu.core_type = #tpu.core_type<tc>, window_params = [{transform_indices = @transform_0, window_bounds = array<i64: 8, 1024>}, {pipeline_mode = #tpu.pipeline_mode<synchronous>, transform_indices = @transform_1, window_bounds = array<i64: 8, 1024>}, {pipeline_mode = #tpu.pipeline_mode<synchronous>, transform_indices = @transform_2, window_bounds = array<i64: 8, 1024>}, {transform_indices = @transform_3, window_bounds = array<i64: 8, 1024>}]} {
    %c0 = arith.constant 0 : index
    %c0_0 = arith.constant 0 : index
    %0 = vector.load %arg1[%c0, %c0_0] : memref<8x1024xf32, #tpu.memory_space<vmem>>, vector<8x1024xf32>
    %cst = arith.constant dense<0.000000e+00> : vector<8xf32>
    %1 = vector.multi_reduction <add>, %0, %cst [1] : vector<8x1024xf32> to vector<8xf32>
    %2 = vector.shape_cast %1 : vector<8xf32> to vector<8x1xf32>
    %cst_1 = arith.constant 1.024000e+03 : f32
    %3 = vector.broadcast %cst_1 : f32 to vector<8x1xf32>
    %4 = arith.divf %2, %3 : vector<8x1xf32>
    %5 = vector.broadcast %4 : vector<8x1xf32> to vector<8x1024xf32>
    %6 = arith.subf %0, %5 : vector<8x1024xf32>
    %7 = arith.mulf %6, %6 : vector<8x1024xf32>
    %cst_2 = arith.constant dense<0.000000e+00> : vector<8xf32>
    %8 = vector.multi_reduction <add>, %7, %cst_2 [1] : vector<8x1024xf32> to vector<8xf32>
    %9 = vector.shape_cast %8 : vector<8xf32> to vector<8x1xf32>
    %cst_3 = arith.constant 1.024000e+03 : f32
    %10 = vector.broadcast %cst_3 : f32 to vector<8x1xf32>
    %11 = arith.divf %9, %10 : vector<8x1xf32>
    %cst_4 = arith.constant 9.99999974E-6 : f32
    %12 = vector.broadcast %cst_4 : f32 to vector<8x1xf32>
    %13 = arith.addf %11, %12 : vector<8x1xf32>
    %14 = math.rsqrt %13 : vector<8x1xf32>
    %c0_5 = arith.constant 0 : index
    %c0_6 = arith.constant 0 : index
    %15 = vector.load %arg2[%c0_5, %c0_6] : memref<8x1024xf32, #tpu.memory_space<vmem>>, vector<8x1024xf32>
    %16 = vector.broadcast %14 : vector<8x1xf32> to vector<8x1024xf32>
    %17 = arith.mulf %15, %16 : vector<8x1024xf32>
    %c0_7 = arith.constant 0 : index
    %c0_8 = arith.constant 0 : index
    %18 = vector.load %arg3[%c0_7, %c0_8] : memref<8x1024xf32, #tpu.memory_space<vmem>>, vector<8x1024xf32>
    %19 = vector.broadcast %4 : vector<8x1xf32> to vector<8x1024xf32>
    %20 = arith.mulf %19, %17 : vector<8x1024xf32>
    %21 = arith.subf %18, %20 : vector<8x1024xf32>
    %22 = arith.mulf %0, %17 : vector<8x1024xf32>
    %23 = arith.addf %22, %21 : vector<8x1024xf32>
    %c0_9 = arith.constant 0 : index
    %c0_10 = arith.constant 0 : index
    %24 = vector.load %arg4[%c0_9, %c0_10] : memref<8x1024xf32, #tpu.memory_space<vmem>>, vector<8x1024xf32>
    tpu.vector_store %arg4[%c0_9, %c0_10], %23 {strides = array<i32>} : memref<8x1024xf32, #tpu.memory_space<vmem>>, vector<8x1024xf32>,
    return
  }
  func.func @transform_0(%arg0: i32) -> (i32, i32) {
    %c0_i32 = arith.constant 0 : i32
    %c0_i32_0 = arith.constant 0 : i32
    return %arg0, %c0_i32 : i32, i32
  }
  func.func @transform_1(%arg0: i32) -> (i32, i32) {
    %c0_i32 = arith.constant 0 : i32
    %c0_i32_0 = arith.constant 0 : i32
    %c0_i32_1 = arith.constant 0 : i32
    return %c0_i32, %c0_i32_0 : i32, i32
  }
  func.func @transform_2(%arg0: i32) -> (i32, i32) {
    %c0_i32 = arith.constant 0 : i32
    %c0_i32_0 = arith.constant 0 : i32
    %c0_i32_1 = arith.constant 0 : i32
    return %c0_i32, %c0_i32_0 : i32, i32
  }
  func.func @transform_3(%arg0: i32) -> (i32, i32) {
    %c0_i32 = arith.constant 0 : i32
    %c0_i32_0 = arith.constant 0 : i32
    return %arg0, %c0_i32 : i32, i32
  }
}

</mosaic_0001>

<llo_original>
// kernel: tpu_custom_call.1
$region0: #{tpu_custom_call.1}
  #allocation0 [shape = 'u32[]', space=smem, size = 0x4, offset = 0x4, fixed_abs, tag = 'smem constant byte address 0x4 - core index']
  #allocation1 [shape = 'u32[144,128]{1,0:T(1,128)}', space=vmem, size = 0x12000, scoped, tag = 'internal scratch']
  %s0 = inlined_call_operand.hbm [shape: f32[16,1024], index: 0, kind: input, shape index: {}]
  %s1 = inlined_call_operand.hbm [shape: f32[8,1024], index: 1, kind: input, shape index: {}]
  %s2 = inlined_call_operand.hbm [shape: f32[8,1024], index: 2, kind: input, shape index: {}]
  %s3 = inlined_call_operand.hbm [shape: f32[16,1024], index: 3, kind: output, shape index: {}]
  %s4 = sld [smem:[#allocation0]]
  $region57: #{tpu_custom_call.1} parent=0
    _
  %s6 = ssub.s32 1, %s4
  %s7 = scalar_select 0, %s6, %s4
  $region1: #{tpu_custom_call.1} parent=0
    #allocation2 [shape = 'u8[65536]{0}', space=vmem, size = 0x10000, scoped, tag = 'input window, operand 0']
    #allocation3 [shape = 's32[2]{0}', space=sflag, size = 0x8, scoped, tag = 'scoped memory for tpu_custom_call.1']
    #allocation4 [shape = 's32[2]{0}', space=sflag, size = 0x8, scoped, tag = 'scoped memory for tpu_custom_call.1']
    #allocation5 [shape = 'u8[32768]{0}', space=vmem, size = 0x8000, scoped, tag = 'input window, operand 1, single buffered']
    #allocation6 [shape = 's32[1]{0}', space=sflag, size = 0x4, scoped, tag = 'scoped memory for tpu_custom_call.1']
    #allocation7 [shape = 'u8[32768]{0}', space=vmem, size = 0x8000, scoped, tag = 'input window, operand 2, single buffered']
    #allocation8 [shape = 'u8[65536]{0}', space=vmem, size = 0x10000, scoped, tag = 'output window, operand 0']
    %8 = vsyncpa [#allocation3], 0
    %s9 = scalar_lea.sflag [#allocation3], 1
    %10 = vsyncpa %s9, 0
    %11 = vsyncpa [#allocation6], 0
    %12 = vsyncpa [#allocation4], 0
    %s13 = scalar_lea.sflag [#allocation4], 1
    %14 = vsyncpa %s13, 0
    loop: start=0, step=1, limit=4
    $region2: #{tpu_custom_call.1} parent=1 // loop_pre_header
      _
    $region3: #{tpu_custom_call.1} parent=1 // loop_header
      %s16 = sphi 0, %s20
      %p17 = scmp.ge.s32.totalorder %s16, 4
      %s26 = sphi 0, %s28
      %s29 = sphi 0, %s26
      %s30 = sphi 0, %s29
      %s46 = sphi 0, %s30
      %s50 = sphi 0, %s50
      %s52 = sphi 0, %s50
      %s53 = sphi 0, %s52
      %s67 = sphi 0, %s53
      %s71 = sphi 0, %s71
      %s73 = sphi 0, %s71
      %s74 = sphi 0, %s73
      %s88 = sphi 0, %s74
      %s94 = sphi 0, %s96
      %s97 = sphi 0, %s94
      %s98 = sphi 0, %s97
      %s114 = sphi 0, %s98
    $region4: #{tpu_custom_call.1} parent=1 // loop_header_branch
      %19 = sbr.rel (%p17) target = $region8
    $region5: #{tpu_custom_call.1} parent=1 // loop_body
      %s21 = ssub.s32 %s16, 1
      %s22 = ssub.s32 %s16, 2
      %s23 = sadd.s32 %s16, 1
      %s24 = ssub.s32 %s16, %s23
      %p25 = scmp.eq.s32.totalorder %s24, 0
      %s27 = sadd.s32 %s26, 1
      %s28 = scalar_select %p25, %s26, %s27
      %p31 = pneg %p25
      %p32 = scmp.eq.s32.totalorder %s16, 1
      %p33 = por %p31, %p32
      %p34 = scmp.ne.s32.totalorder %s26, %s29
      %p35 = scmp.eq.s32.totalorder %s16, 0
      %p36 = por %p34, %p35
      %p37 = scmp.ne.s32.totalorder %s26, %s29
      %p38 = scmp.eq.s32.totalorder %s21, 1
      %p39 = por %p37, %p38
      %p40 = scmp.ne.s32.totalorder %s29, %s30
      %p41 = scmp.eq.s32.totalorder %s21, 0
      %p42 = por %p40, %p41
      %p43 = scmp.ne.s32.totalorder %s29, %s30
      %p44 = scmp.eq.s32.totalorder %s22, 1
      %p45 = por %p43, %p44
      %p47 = scmp.ne.s32.totalorder %s30, %s46
      %p48 = scmp.eq.s32.totalorder %s22, 0
      %p49 = por %p47, %p48
      %s51 = sadd.s32 %s50, 1
      %p54 = scmp.eq.s32.totalorder %s16, 1
      %p55 = scmp.ne.s32.totalorder %s50, %s52
      %p56 = scmp.eq.s32.totalorder %s16, 0
      %p57 = por %p55, %p56
      %p58 = scmp.ne.s32.totalorder %s50, %s52
      %p59 = scmp.eq.s32.totalorder %s21, 1
      %p60 = por %p58, %p59
      %p61 = scmp.ne.s32.totalorder %s52, %s53
      %p62 = scmp.eq.s32.totalorder %s21, 0
      %p63 = por %p61, %p62
      %p64 = scmp.ne.s32.totalorder %s52, %s53
      %p65 = scmp.eq.s32.totalorder %s22, 1
      %p66 = por %p64, %p65
      %p68 = scmp.ne.s32.totalorder %s53, %s67
      %p69 = scmp.eq.s32.totalorder %s22, 0
      %p70 = por %p68, %p69
      %s72 = sadd.s32 %s71, 1
      %p75 = scmp.eq.s32.totalorder %s16, 1
      %p76 = scmp.ne.s32.totalorder %s71, %s73
      %p77 = scmp.eq.s32.totalorder %s16, 0
      %p78 = por %p76, %p77
      %p79 = scmp.ne.s32.totalorder %s71, %s73
      %p80 = scmp.eq.s32.totalorder %s21, 1
      %p81 = por %p79, %p80
      %p82 = scmp.ne.s32.totalorder %s73, %s74
      %p83 = scmp.eq.s32.totalorder %s21, 0
      %p84 = por %p82, %p83
      %p85 = scmp.ne.s32.totalorder %s73, %s74
      %p86 = scmp.eq.s32.totalorder %s22, 1
      %p87 = por %p85, %p86
      %p89 = scmp.ne.s32.totalorder %s74, %s88
      %p90 = scmp.eq.s32.totalorder %s22, 0
      %p91 = por %p89, %p90
      %s92 = ssub.s32 %s16, %s23
      %p93 = scmp.eq.s32.totalorder %s92, 0
      %s95 = sadd.s32 %s94, 1
      %s96 = scalar_select %p93, %s94, %s95
      %p99 = pneg %p93
      %p100 = scmp.eq.s32.totalorder %s16, 1
      %p101 = por %p99, %p100
      %p102 = scmp.ne.s32.totalorder %s94, %s97
      %p103 = scmp.eq.s32.totalorder %s16, 0
      %p104 = por %p102, %p103
      %p105 = scmp.ne.s32.totalorder %s94, %s97
      %p106 = scmp.eq.s32.totalorder %s21, 1
      %p107 = por %p105, %p106
      %p108 = scmp.ne.s32.totalorder %s97, %s98
      %p109 = scmp.eq.s32.totalorder %s21, 0
      %p110 = por %p108, %p109
      %p111 = scmp.ne.s32.totalorder %s97, %s98
      %p112 = scmp.eq.s32.totalorder %s22, 1
      %p113 = por %p111, %p112
      %p115 = scmp.ne.s32.totalorder %s98, %s114
      %p116 = scmp.eq.s32.totalorder %s22, 0
      %p117 = por %p115, %p116
      %p118 = scmp.le.s32.totalorder 1, %s16
      %p119 = scmp.lt.s32.totalorder %s16, 3
      %p120 = pnand %p118, %p119
      %p121 = pneg %p120
      // Predicated region
      $region9: #{tpu_custom_call.1} parent=5 // pred_check
        _
      $region10: #{tpu_custom_call.1} parent=5 // pred_check_branch
        %123 = sbr.rel (%p120) target = $region12
      $region11: #{tpu_custom_call.1} parent=5 // pred_region
        %s124 = ssub.s32 %s16, 1
        // Predicated region
        $region13: #{tpu_custom_call.1} parent=11 // pred_check
          %p125 = pneg %p63
        $region14: #{tpu_custom_call.1} parent=11 // pred_check_branch
          %127 = sbr.rel (%p125) target = $region16
        $region15: #{tpu_custom_call.1} parent=11 // pred_region
          %s129 = ssub.s32 1024, 1024
          %130 = vsyncadd [#allocation6], %s129
          %s132 = sshll.u32 [#allocation5], 4
          %s133 = int_to_ptr.vmem [resolvable:$true] %s132
          %135 = dma.hbm_to_vmem [thread:$0]  %s1, 1024, %s133, [#allocation6]
        $region16: #{tpu_custom_call.1} parent=11 // pred_fallthru
          _
        // Predicated region
        $region17: #{tpu_custom_call.1} parent=11 // pred_check
          %p136 = pneg %p84
        $region18: #{tpu_custom_call.1} parent=11 // pred_check_branch
          %138 = sbr.rel (%p136) target = $region20
        $region19: #{tpu_custom_call.1} parent=11 // pred_region
          %s140 = ssub.s32 1024, 1024
          %141 = vsyncadd [#allocation6], %s140
          %s143 = sshll.u32 [#allocation7], 4
          %s144 = int_to_ptr.vmem [resolvable:$true] %s143
          %146 = dma.hbm_to_vmem [thread:$0]  %s2, 1024, %s144, [#allocation6]
        $region20: #{tpu_custom_call.1} parent=11 // pred_fallthru
          _
      $region12: #{tpu_custom_call.1} parent=5 // pred_fallthru
        _
      %p147 = scmp.lt.s32.totalorder %s16, 2
      // Predicated region
      $region21: #{tpu_custom_call.1} parent=5 // pred_check
        %p148 = pneg %p147
      $region22: #{tpu_custom_call.1} parent=5 // pred_check_branch
        %150 = sbr.rel (%p148) target = $region24
      $region23: #{tpu_custom_call.1} parent=5 // pred_region
        // Predicated region
        $region25: #{tpu_custom_call.1} parent=23 // pred_check
          %p151 = pneg %p36
        $region26: #{tpu_custom_call.1} parent=23 // pred_check_branch
          %153 = sbr.rel (%p151) target = $region28
        $region27: #{tpu_custom_call.1} parent=23 // pred_region
          %s154 = sand.u32 %s26, 1
          %s155 = scalar_lea.sflag [#allocation3], %s154
          %s156 = sand.u32 %s26, 1
          %s157 = smul.addr %s156, 64
          %s158 = scalar_lea.vmem [#allocation2], %s157
          %s160 = ssub.s32 1024, 1024
          %161 = vsyncadd %s155, %s160
          %s162 = smul.addr %s16, 8
          %s163 = smul.addr %s162, 128
          %s164 = scalar_lea.hbm %s0, %s163
          %s166 = sshll.u32 %s158, 4
          %s167 = int_to_ptr.vmem [resolvable:$true] %s166
          %169 = dma.hbm_to_vmem [thread:$0]  %s164, 1024, %s167, %s155
        $region28: #{tpu_custom_call.1} parent=23 // pred_fallthru
          _
      $region24: #{tpu_custom_call.1} parent=5 // pred_fallthru
        _
      %p170 = scmp.le.s32.totalorder 1, %s16
      %p171 = scmp.lt.s32.totalorder %s16, 3
      %p172 = pnand %p170, %p171
      %p173 = pneg %p172
      // Predicated region
      $region29: #{tpu_custom_call.1} parent=5 // pred_check
        _
      $region30: #{tpu_custom_call.1} parent=5 // pred_check_branch
        %175 = sbr.rel (%p172) target = $region32
      $region31: #{tpu_custom_call.1} parent=5 // pred_region
        %s176 = ssub.s32 %s16, 1
        %s177 = sand.u32 %s29, 1
        %s178 = scalar_lea.sflag [#allocation3], %s177
        %s179 = sand.u32 %s29, 1
        %s180 = smul.addr %s179, 64
        %s181 = scalar_lea.vmem [#allocation2], %s180
        // Predicated region
        $region33: #{tpu_custom_call.1} parent=31 // pred_check
          %p182 = pneg %p42
        $region34: #{tpu_custom_call.1} parent=31 // pred_check_branch
          %184 = sbr.rel (%p182) target = $region36
        $region35: #{tpu_custom_call.1} parent=31 // pred_region
          %185 = dma.done %s178, 1024
        $region36: #{tpu_custom_call.1} parent=31 // pred_fallthru
          _
        // Predicated region
        $region37: #{tpu_custom_call.1} parent=31 // pred_check
          %p186 = pneg %p63
        $region38: #{tpu_custom_call.1} parent=31 // pred_check_branch
          %188 = sbr.rel (%p186) target = $region40
        $region39: #{tpu_custom_call.1} parent=31 // pred_region
          %189 = dma.done [#allocation6], 1024
        $region40: #{tpu_custom_call.1} parent=31 // pred_fallthru
          _
        // Predicated region
        $region41: #{tpu_custom_call.1} parent=31 // pred_check
          %p190 = pneg %p84
        $region42: #{tpu_custom_call.1} parent=31 // pred_check_branch
          %192 = sbr.rel (%p190) target = $region44
        $region43: #{tpu_custom_call.1} parent=31 // pred_region
          %193 = dma.done [#allocation6], 1024
        $region44: #{tpu_custom_call.1} parent=31 // pred_fallthru
          _
        %s194 = sand.u32 %s29, 1
        %s195 = scalar_lea.sflag [#allocation3], %s194
        %s196 = sand.u32 %s29, 1
        %s197 = smul.addr %s196, 64
        %s198 = scalar_lea.vmem [#allocation2], %s197
        %p199 = pneg %p42
        %p200 = pneg %p39
        %p201 = pneg %p63
        %p202 = pneg %p60
        %p203 = pneg %p84
        %p204 = pneg %p81
        %p205 = pneg %p110
        %p206 = pneg %p107
        %s207 = sand.u32 %s97, 1
        %s208 = scalar_lea.sflag [#allocation4], %s207
        %s209 = sand.u32 %s97, 1
        %s210 = smul.addr %s209, 64
        %s211 = scalar_lea.vmem [#allocation8], %s210
        %v212 = vld [vmem:[%s181] sm:$0xff]
        %v213 = vld [vmem:[%s181 + $0x8] sm:$0xff]
        %v214 = vld [vmem:[%s181 + $0x10] sm:$0xff]
        %v215 = vld [vmem:[%s181 + $0x18] sm:$0xff]
        %v216 = vld [vmem:[%s181 + $0x20] sm:$0xff]
        %v217 = vld [vmem:[%s181 + $0x28] sm:$0xff]
        %v218 = vld [vmem:[%s181 + $0x30] sm:$0xff]
        %v219 = vld [vmem:[%s181 + $0x38] sm:$0xff]
        %v220 = vadd.f32 %v212, %v213
        %v221 = vadd.f32 %v220, %v214
        %v222 = vadd.f32 %v221, %v215
        %v223 = vadd.f32 %v222, %v216
        %v224 = vadd.f32 %v223, %v217
        %v225 = vadd.f32 %v224, %v218
        %v226 = vadd.f32 %v225, %v219
        %227 = vadd.xlane.f32.xlu0 %v226
        %v228 = vpop.xlane.xlu0 %227
        %v229 = vrcp.pop 1024.0
        %v230 = vmul.f32 %v228, %v229
        %v231 = vsub.f32 %v212, %v230
        %v232 = vsub.f32 %v213, %v230
        %v233 = vsub.f32 %v214, %v230
        %v234 = vsub.f32 %v215, %v230
        %v235 = vsub.f32 %v216, %v230
        %v236 = vsub.f32 %v217, %v230
        %v237 = vsub.f32 %v218, %v230
        %v238 = vsub.f32 %v219, %v230
        %v239 = vmul.f32 %v231, %v231
        %v240 = vmul.f32 %v232, %v232
        %v241 = vmul.f32 %v233, %v233
        %v242 = vmul.f32 %v234, %v234
        %v243 = vmul.f32 %v235, %v235
        %v244 = vmul.f32 %v236, %v236
        %v245 = vmul.f32 %v237, %v237
        %v246 = vmul.f32 %v238, %v238
        %v247 = vadd.f32 %v239, %v240
        %v248 = vadd.f32 %v247, %v241
        %v249 = vadd.f32 %v248, %v242
        %v250 = vadd.f32 %v249, %v243
        %v251 = vadd.f32 %v250, %v244
        %v252 = vadd.f32 %v251, %v245
        %v253 = vadd.f32 %v252, %v246
        %254 = vadd.xlane.f32.xlu0 %v253
        %v255 = vpop.xlane.xlu0 %254
        %v256 = vmul.f32 %v255, %v229
        %v257 = vadd.f32 %v256, 1e-05
        %v258 = vrsqrt.pop %v257
        %v259 = vld [vmem:[#allocation5] sm:$0xff]
        %v260 = vld [vmem:[#allocation5 + $0x8] sm:$0xff]
        %v261 = vld [vmem:[#allocation5 + $0x10] sm:$0xff]
        %v262 = vld [vmem:[#allocation5 + $0x18] sm:$0xff]
        %v263 = vld [vmem:[#allocation5 + $0x20] sm:$0xff]
        %v264 = vld [vmem:[#allocation5 + $0x28] sm:$0xff]
        %v265 = vld [vmem:[#allocation5 + $0x30] sm:$0xff]
        %v266 = vld [vmem:[#allocation5 + $0x38] sm:$0xff]
        %v267 = vmul.f32 %v259, %v258
        %v268 = vmul.f32 %v260, %v258
        %v269 = vmul.f32 %v261, %v258
        %v270 = vmul.f32 %v262, %v258
        %v271 = vmul.f32 %v263, %v258
        %v272 = vmul.f32 %v264, %v258
        %v273 = vmul.f32 %v265, %v258
        %v274 = vmul.f32 %v266, %v258
        %v275 = vld [vmem:[#allocation7] sm:$0xff]
        %v276 = vld [vmem:[#allocation7 + $0x8] sm:$0xff]
        %v277 = vld [vmem:[#allocation7 + $0x10] sm:$0xff]
        %v278 = vld [vmem:[#allocation7 + $0x18] sm:$0xff]
        %v279 = vld [vmem:[#allocation7 + $0x20] sm:$0xff]
        %v280 = vld [vmem:[#allocation7 + $0x28] sm:$0xff]
        %v281 = vld [vmem:[#allocation7 + $0x30] sm:$0xff]
        %v282 = vld [vmem:[#allocation7 + $0x38] sm:$0xff]
        %v283 = vmul.f32 %v230, %v267
        %v284 = vmul.f32 %v230, %v268
        %v285 = vmul.f32 %v230, %v269
        %v286 = vmul.f32 %v230, %v270
        %v287 = vmul.f32 %v230, %v271
        %v288 = vmul.f32 %v230, %v272
        %v289 = vmul.f32 %v230, %v273
        %v290 = vmul.f32 %v230, %v274
        %v291 = vsub.f32 %v275, %v283
        %v292 = vsub.f32 %v276, %v284
        %v293 = vsub.f32 %v277, %v285
        %v294 = vsub.f32 %v278, %v286
        %v295 = vsub.f32 %v279, %v287
        %v296 = vsub.f32 %v280, %v288
        %v297 = vsub.f32 %v281, %v289
        %v298 = vsub.f32 %v282, %v290
        %v299 = vmul.f32 %v212, %v267
        %v300 = vmul.f32 %v213, %v268
        %v301 = vmul.f32 %v214, %v269
        %v302 = vmul.f32 %v215, %v270
        %v303 = vmul.f32 %v216, %v271
        %v304 = vmul.f32 %v217, %v272
        %v305 = vmul.f32 %v218, %v273
        %v306 = vmul.f32 %v219, %v274
        %v307 = vadd.f32 %v299, %v291
        %v308 = vadd.f32 %v300, %v292
        %v309 = vadd.f32 %v301, %v293
        %v310 = vadd.f32 %v302, %v294
        %v311 = vadd.f32 %v303, %v295
        %v312 = vadd.f32 %v304, %v296
        %v313 = vadd.f32 %v305, %v297
        %v314 = vadd.f32 %v306, %v298
        %315 = vst [vmem:[%s211] sm:$0xff] %v307
        %316 = vst [vmem:[%s211 + $0x8] sm:$0xff] %v308
        %317 = vst [vmem:[%s211 + $0x10] sm:$0xff] %v309
        %318 = vst [vmem:[%s211 + $0x18] sm:$0xff] %v310
        %319 = vst [vmem:[%s211 + $0x20] sm:$0xff] %v311
        %320 = vst [vmem:[%s211 + $0x28] sm:$0xff] %v312
        %321 = vst [vmem:[%s211 + $0x30] sm:$0xff] %v313
        %322 = vst [vmem:[%s211 + $0x38] sm:$0xff] %v314
        %s323 = sand.u32 %s97, 1
        %s324 = scalar_lea.sflag [#allocation4], %s323
        %s325 = sand.u32 %s97, 1
        %s326 = smul.addr %s325, 64
        %s327 = scalar_lea.vmem [#allocation8], %s326
        // Predicated region
        $region45: #{tpu_custom_call.1} parent=31 // pred_check
          %p328 = pneg %p107
        $region46: #{tpu_custom_call.1} parent=31 // pred_check_branch
          %330 = sbr.rel (%p328) target = $region48
        $region47: #{tpu_custom_call.1} parent=31 // pred_region
          %s332 = ssub.s32 1024, 1024
          %333 = vsyncadd %s324, %s332
          %s334 = smul.addr %s21, 8
          %s335 = smul.addr %s334, 128
          %s336 = scalar_lea.hbm %s3, %s335
          %s338 = sshll.u32 %s327, 4
          %s339 = int_to_ptr.vmem [resolvable:$true] %s338
          %341 = dma.vmem_to_hbm [thread:$0]  %s339, 1024, %s336, %s324
        $region48: #{tpu_custom_call.1} parent=31 // pred_fallthru
          _
      $region32: #{tpu_custom_call.1} parent=5 // pred_fallthru
        _
      %p342 = scmp.le.s32.totalorder 2, %s16
      // Predicated region
      $region49: #{tpu_custom_call.1} parent=5 // pred_check
        %p343 = pneg %p342
      $region50: #{tpu_custom_call.1} parent=5 // pred_check_branch
        %345 = sbr.rel (%p343) target = $region52
      $region51: #{tpu_custom_call.1} parent=5 // pred_region
        %s346 = ssub.s32 %s16, 2
        // Predicated region
        $region53: #{tpu_custom_call.1} parent=51 // pred_check
          %p347 = pneg %p113
        $region54: #{tpu_custom_call.1} parent=51 // pred_check_branch
          %349 = sbr.rel (%p347) target = $region56
        $region55: #{tpu_custom_call.1} parent=51 // pred_region
          %s350 = sand.u32 %s98, 1
          %s351 = scalar_lea.sflag [#allocation4], %s350
          %s352 = sand.u32 %s98, 1
          %s353 = smul.addr %s352, 64
          %s354 = scalar_lea.vmem [#allocation8], %s353
          %355 = dma.done %s351, 1024
        $region56: #{tpu_custom_call.1} parent=51 // pred_fallthru
          _
      $region52: #{tpu_custom_call.1} parent=5 // pred_fallthru
        _
    $region6: #{tpu_custom_call.1} parent=1 // loop_footer
      %s20 = sadd.s32 1, %s16
    $region7: #{tpu_custom_call.1} parent=1 // loop_footer_branch
      %15 = sbr.rel target = $region3
    $region8: #{tpu_custom_call.1} parent=1 // loop_exit
      _
    %356 = vsyncpa [#allocation3], 1
    %s357 = scalar_lea.sflag [#allocation3], 1
    %358 = vsyncpa %s357, 1
    %359 = vsyncpa [#allocation6], 1
    %360 = vsyncpa [#allocation4], 1
    %s361 = scalar_lea.sflag [#allocation4], 1
    %362 = vsyncpa %s361, 1

</llo_original>
